<compile_context>
chip_gen: v5e
topology: v5e:2x2
jax: 0.10.0
libtpu: 0.0.40
codegen_flags: <defaults>
</compile_context>

<pallas_src>
import jax
import jax.numpy as jnp
from jax.experimental import pallas as pl
from jax.experimental.pallas import tpu as pltpu


def _round_up(x, m):
    return ((x + m - 1) // m) * m


def surrogate_mlp_kernel(theta_ref,
                         w1_ref, b1_ref,
                         w2_ref, b2_ref,
                         w3_ref, b3_ref,
                         out_ref):
    """One batch-tile of the surrogate MLP forward pass.

    theta block : (TB, d_in) f32  (unpadded K; cast to bf16 in-kernel)
    weights     : bf16, VMEM-resident across grid steps (constant index_map)
    biases      : f32  (1, N_p)
    matmuls     : bf16 x bf16 on the MXU with f32 accumulation
    elementwise : f32 (bias add + ReLU)
    output      : bf16 (lane-dense, 128-wide) -> halved writeback DMA
    """
    x = theta_ref[...].astype(jnp.bfloat16)                       # (TB, d_in)

    # Layer 1: Linear + ReLU  (MXU pads K=d_in internally)
    h1 = jnp.dot(x, w1_ref[...], preferred_element_type=jnp.float32)
    h1 = jnp.maximum(h1 + b1_ref[...], 0.0)

    # Layer 2: Linear + ReLU
    h2 = jnp.dot(h1.astype(jnp.bfloat16), w2_ref[...],
                 preferred_element_type=jnp.float32)
    h2 = jnp.maximum(h2 + b2_ref[...], 0.0)

    # Layer 3: Linear (no activation), bf16 writeback
    y = jnp.dot(h2.astype(jnp.bfloat16), w3_ref[...],
                preferred_element_type=jnp.float32)
    out_ref[...] = (y + b3_ref[...]).astype(out_ref.dtype)


def _pad2(a, rows, cols, dtype):
    """Zero-pad a 2-D array to (rows, cols) and cast to dtype."""
    out = jnp.zeros((rows, cols), dtype)
    return out.at[: a.shape[0], : a.shape[1]].set(a.astype(dtype))


def prepare_params(params):
    """One-time padding / bf16 casting of the checkpoint weights.

    Hoisted out of the per-call path (perf review).  Zero padding is exact for
    this MLP: padded hidden lanes get bias 0 -> ReLU(0) = 0 -> hit zero weight
    rows in the next layer.
    """
    w1, b1, w2, b2, w3, b3 = params
    d_in, hidden = w1.shape
    d_out = w3.shape[1]
    h_p = _round_up(hidden, 128)
    d_out_p = _round_up(d_out, 128)
    return dict(
        d_in=d_in, d_out=d_out, h_p=h_p, d_out_p=d_out_p,
        w1=_pad2(w1, d_in, h_p, jnp.bfloat16),     # K kept unpadded
        b1=_pad2(b1, 1, h_p, jnp.float32),
        w2=_pad2(w2, h_p, h_p, jnp.bfloat16),
        b2=_pad2(b2, 1, h_p, jnp.float32),
        w3=_pad2(w3, h_p, d_out_p, jnp.bfloat16),
        b3=_pad2(b3, 1, d_out_p, jnp.float32),
    )


def surrogate_forward_padded(theta, pp, *, target_steps=2, max_batch_tile=2048):
    """Hot-path entry: theta (B, d_in) f32 -> (B_pad, d_out_p) bf16.

    No per-call weight padding, no trailing slice.  1-D grid over the batch;
    tb is chosen so the grid has ~target_steps steps (>= 2 keeps both v7x
    TensorCores busy; on v5e/v6e the one extra ~0.35 µs step is noise).
    """
    B, d_in = theta.shape
    assert d_in == pp["d_in"]

    tb = min(max_batch_tile, _round_up(pl.cdiv(B, target_steps), 8))
    b_pad = _round_up(B, tb)
    if b_pad != B:
        # Ragged-batch fallback only; when tb | B this extra HBM pass is skipped.
        theta = jnp.zeros((b_pad, d_in), theta.dtype).at[:B].set(theta)

    const = lambda a: pl.BlockSpec(a.shape, lambda i: (0, 0))   # VMEM-resident

    # TODO(synk): if the real checkpoint's hidden dim is large (w2 = tens of
    # MiB bf16), keep-all-weights-resident no longer fits v7x's 64 MiB VMEM:
    # add a K-reduction grid axis marked "arbitrary" (or emit_pipeline) and set
    # vmem_limit_bytes explicitly instead.

    out_p = pl.pallas_call(
        surrogate_mlp_kernel,
        out_shape=jax.ShapeDtypeStruct((b_pad, pp["d_out_p"]), jnp.bfloat16),
        grid=(b_pad // tb,),
        in_specs=[pl.BlockSpec((tb, d_in), lambda i: (i, 0)),
                  const(pp["w1"]), const(pp["b1"]),
                  const(pp["w2"]), const(pp["b2"]),
                  const(pp["w3"]), const(pp["b3"])],
        out_specs=pl.BlockSpec((tb, pp["d_out_p"]), lambda i: (i, 0)),
        compiler_params=pltpu.CompilerParams(
            dimension_semantics=("parallel",)),
    )(theta, pp["w1"], pp["b1"], pp["w2"], pp["b2"], pp["w3"], pp["b3"])
    return out_p


def surrogate_forward(theta, pp, **kw):
    """Module-semantics entry: returns (B, d_out) f32, like `net(theta)`.

    One small slice + upcast over the (B, d_out_p) bf16 kernel output; callers
    in a hot loop should consume surrogate_forward_padded() directly.
    """
    B = theta.shape[0]
    out_p = surrogate_forward_padded(theta, pp, **kw)
    return out_p[:B, : pp["d_out"]].astype(jnp.float32)


def init_params(key, d_in, hidden, d_out):
    """Deterministic synthetic weights (stand-in for torch.load)."""
    k = jax.random.split(key, 6)
    scale = lambda fan_in: 1.0 / jnp.sqrt(jnp.float32(fan_in))
    w1 = jax.random.normal(k[0], (d_in, hidden), jnp.float32) * scale(d_in)
    b1 = jax.random.normal(k[1], (1, hidden), jnp.float32) * 0.1
    w2 = jax.random.normal(k[2], (hidden, hidden), jnp.float32) * scale(hidden)
    b2 = jax.random.normal(k[3], (1, hidden), jnp.float32) * 0.1
    w3 = jax.random.normal(k[4], (hidden, d_out), jnp.float32) * scale(hidden)
    b3 = jax.random.normal(k[5], (1, d_out), jnp.float32) * 0.1
    return (w1, b1, w2, b2, w3, b3)


def surrogate_ref(theta, params):
    """Plain-JAX reference matching the kernel's dtype path:
    bf16 matmul inputs, f32 accumulation, f32 bias/ReLU (output kept in f32;
    the kernel additionally rounds the final output to bf16)."""
    w1, b1, w2, b2, w3, b3 = params
    bf = lambda a: a.astype(jnp.bfloat16).astype(jnp.float32)
    hp = jax.lax.Precision.HIGHEST
    h1 = jnp.maximum(jnp.dot(bf(theta), bf(w1), precision=hp) + b1, 0.0)
    h2 = jnp.maximum(jnp.dot(bf(h1), bf(w2), precision=hp) + b2, 0.0)
    return jnp.dot(bf(h2), bf(w3), precision=hp) + b3


if __name__ == "__main__":
    key = jax.random.PRNGKey(0)
    k_theta, k_params, k_small = jax.random.split(key, 3)

    D_IN, HIDDEN, D_OUT = 16, 32, 4
    params = init_params(k_params, D_IN, HIDDEN, D_OUT)
    # One-time padding / casting of the surrogate weights (hoisted per review).
    pp = prepare_params(params)

    # Main case: B=512 -> tb=256, 2 grid steps (exercises the parallel batch
    # grid; no batch padding, no theta lane padding).
    B = 512
    theta = jax.random.normal(k_theta, (B, D_IN), jnp.float32)
    out = jax.block_until_ready(surrogate_forward(theta, pp))
    ref = surrogate_ref(theta, params)
    assert out.shape == (B, D_OUT)
    # bf16 output writeback -> ~3 decimal digits; tolerance loosened accordingly.
    assert jnp.allclose(out, ref, atol=2e-2, rtol=2e-2)

    # Tiny batch: single 8-row step, exercises the small-B path + final slice.
    theta_small = jax.random.normal(k_small, (8, D_IN), jnp.float32)
    out_small = jax.block_until_ready(surrogate_forward(theta_small, pp))
    assert out_small.shape == (8, D_OUT)
    assert jnp.allclose(out_small, surrogate_ref(theta_small, params),
                        atol=2e-2, rtol=2e-2)

    print("KERNEL_OK")
</pallas_src>

<mosaic_0001>
module attributes {stable_mosaic.version = 11 : i64} {
  func.func @surrogate_mlp_kernel(%arg0: i32, %arg1: memref<256x16xf32, #tpu.memory_space<vmem>>, %arg2: memref<16x128xbf16, #tpu.memory_space<vmem>>, %arg3: memref<1x128xf32, #tpu.memory_space<vmem>>, %arg4: memref<128x128xbf16, #tpu.memory_space<vmem>>, %arg5: memref<1x128xf32, #tpu.memory_space<vmem>>, %arg6: memref<128x128xbf16, #tpu.memory_space<vmem>>, %arg7: memref<1x128xf32, #tpu.memory_space<vmem>>, %arg8: memref<256x128xbf16, #tpu.memory_space<vmem>>) attributes {dimension_semantics = [#tpu.dimension_semantics<parallel>], iteration_bounds = array<i64: 2>, scalar_prefetch = 0 : i64, scratch_operands = 0 : i64, tpu.core_type = #tpu.core_type<tc>, window_params = [{transform_indices = @transform_0, window_bounds = array<i64: 256, 16>}, {pipeline_mode = #tpu.pipeline_mode<synchronous>, transform_indices = @transform_1, window_bounds = array<i64: 16, 128>}, {pipeline_mode = #tpu.pipeline_mode<synchronous>, transform_indices = @transform_2, window_bounds = array<i64: 1, 128>}, {pipeline_mode = #tpu.pipeline_mode<synchronous>, transform_indices = @transform_3, window_bounds = array<i64: 128, 128>}, {pipeline_mode = #tpu.pipeline_mode<synchronous>, transform_indices = @transform_4, window_bounds = array<i64: 1, 128>}, {pipeline_mode = #tpu.pipeline_mode<synchronous>, transform_indices = @transform_5, window_bounds = array<i64: 128, 128>}, {pipeline_mode = #tpu.pipeline_mode<synchronous>, transform_indices = @transform_6, window_bounds = array<i64: 1, 128>}, {transform_indices = @transform_7, window_bounds = array<i64: 256, 128>}]} {
    %c0 = arith.constant 0 : index
    %c0_0 = arith.constant 0 : index
    %0 = vector.load %arg1[%c0, %c0_0] : memref<256x16xf32, #tpu.memory_space<vmem>>, vector<256x16xf32>
    %1 = arith.truncf %0 : vector<256x16xf32> to vector<256x16xbf16>
    %c0_1 = arith.constant 0 : index
    %c0_2 = arith.constant 0 : index
    %2 = vector.load %arg2[%c0_1, %c0_2] : memref<16x128xbf16, #tpu.memory_space<vmem>>, vector<16x128xbf16>
    %cst = arith.constant dense<0.000000e+00> : vector<256x128xf32>
    %3 = tpu.matmul %1, %2, %cst {dimension_numbers = #tpu.dot_dimension_numbers<[1], [0], [0], [1], [0, 0, 1, 1], [], []>} : vector<256x16xbf16>, vector<16x128xbf16>, vector<256x128xf32> -> vector<256x128xf32>
    %c0_3 = arith.constant 0 : index
    %c0_4 = arith.constant 0 : index
    %4 = vector.load %arg3[%c0_3, %c0_4] : memref<1x128xf32, #tpu.memory_space<vmem>>, vector<1x128xf32>
    %5 = vector.broadcast %4 : vector<1x128xf32> to vector<256x128xf32>
    %6 = arith.addf %3, %5 : vector<256x128xf32>
    %cst_5 = arith.constant 0.000000e+00 : f32
    %7 = vector.broadcast %cst_5 : f32 to vector<256x128xf32>
    %8 = arith.maximumf %6, %7 : vector<256x128xf32>
    %9 = arith.truncf %8 : vector<256x128xf32> to vector<256x128xbf16>
    %c0_6 = arith.constant 0 : index
    %c0_7 = arith.constant 0 : index
    %10 = vector.load %arg4[%c0_6, %c0_7] : memref<128x128xbf16, #tpu.memory_space<vmem>>, vector<128x128xbf16>
    %cst_8 = arith.constant dense<0.000000e+00> : vector<256x128xf32>
    %11 = tpu.matmul %9, %10, %cst_8 {dimension_numbers = #tpu.dot_dimension_numbers<[1], [0], [0], [1], [0, 0, 1, 1], [], []>} : vector<256x128xbf16>, vector<128x128xbf16>, vector<256x128xf32> -> vector<256x128xf32>
    %c0_9 = arith.constant 0 : index
    %c0_10 = arith.constant 0 : index
    %12 = vector.load %arg5[%c0_9, %c0_10] : memref<1x128xf32, #tpu.memory_space<vmem>>, vector<1x128xf32>
    %13 = vector.broadcast %12 : vector<1x128xf32> to vector<256x128xf32>
    %14 = arith.addf %11, %13 : vector<256x128xf32>
    %cst_11 = arith.constant 0.000000e+00 : f32
    %15 = vector.broadcast %cst_11 : f32 to vector<256x128xf32>
    %16 = arith.maximumf %14, %15 : vector<256x128xf32>
    %17 = arith.truncf %16 : vector<256x128xf32> to vector<256x128xbf16>
    %c0_12 = arith.constant 0 : index
    %c0_13 = arith.constant 0 : index
    %18 = vector.load %arg6[%c0_12, %c0_13] : memref<128x128xbf16, #tpu.memory_space<vmem>>, vector<128x128xbf16>
    %cst_14 = arith.constant dense<0.000000e+00> : vector<256x128xf32>
    %19 = tpu.matmul %17, %18, %cst_14 {dimension_numbers = #tpu.dot_dimension_numbers<[1], [0], [0], [1], [0, 0, 1, 1], [], []>} : vector<256x128xbf16>, vector<128x128xbf16>, vector<256x128xf32> -> vector<256x128xf32>
    %c0_15 = arith.constant 0 : index
    %c0_16 = arith.constant 0 : index
    %20 = vector.load %arg7[%c0_15, %c0_16] : memref<1x128xf32, #tpu.memory_space<vmem>>, vector<1x128xf32>
    %21 = vector.broadcast %20 : vector<1x128xf32> to vector<256x128xf32>
    %22 = arith.addf %19, %21 : vector<256x128xf32>
    %23 = arith.truncf %22 : vector<256x128xf32> to vector<256x128xbf16>
    %c0_17 = arith.constant 0 : index
    %c0_18 = arith.constant 0 : index
    %24 = vector.load %arg8[%c0_17, %c0_18] : memref<256x128xbf16, #tpu.memory_space<vmem>>, vector<256x128xbf16>
    tpu.vector_store %arg8[%c0_17, %c0_18], %23 {strides = array<i32>} : memref<256x128xbf16, #tpu.memory_space<vmem>>, vector<256x128xbf16>,
    return
  }
  func.func @transform_0(%arg0: i32) -> (i32, i32) {
    %c0_i32 = arith.constant 0 : i32
    %c0_i32_0 = arith.constant 0 : i32
    return %arg0, %c0_i32 : i32, i32
  }
  func.func @transform_1(%arg0: i32) -> (i32, i32) {
    %c0_i32 = arith.constant 0 : i32
    %c0_i32_0 = arith.constant 0 : i32
    %c0_i32_1 = arith.constant 0 : i32
    return %c0_i32, %c0_i32_0 : i32, i32
  }
  func.func @transform_2(%arg0: i32) -> (i32, i32) {
    %c0_i32 = arith.constant 0 : i32
    %c0_i32_0 = arith.constant 0 : i32
    %c0_i32_1 = arith.constant 0 : i32
    return %c0_i32, %c0_i32_0 : i32, i32
  }
  func.func @transform_3(%arg0: i32) -> (i32, i32) {
    %c0_i32 = arith.constant 0 : i32
    %c0_i32_0 = arith.constant 0 : i32
    %c0_i32_1 = arith.constant 0 : i32
    return %c0_i32, %c0_i32_0 : i32, i32
  }
  func.func @transform_4(%arg0: i32) -> (i32, i32) {
    %c0_i32 = arith.constant 0 : i32
    %c0_i32_0 = arith.constant 0 : i32
    %c0_i32_1 = arith.constant 0 : i32
    return %c0_i32, %c0_i32_0 : i32, i32
  }
  func.func @transform_5(%arg0: i32) -> (i32, i32) {
    %c0_i32 = arith.constant 0 : i32
    %c0_i32_0 = arith.constant 0 : i32
    %c0_i32_1 = arith.constant 0 : i32
    return %c0_i32, %c0_i32_0 : i32, i32
  }
  func.func @transform_6(%arg0: i32) -> (i32, i32) {
    %c0_i32 = arith.constant 0 : i32
    %c0_i32_0 = arith.constant 0 : i32
    %c0_i32_1 = arith.constant 0 : i32
    return %c0_i32, %c0_i32_0 : i32, i32
  }
  func.func @transform_7(%arg0: i32) -> (i32, i32) {
    %c0_i32 = arith.constant 0 : i32
    %c0_i32_0 = arith.constant 0 : i32
    return %arg0, %c0_i32 : i32, i32
  }
}

</mosaic_0001>

<llo_original>
// kernel: tpu_custom_call.1
$region0: #{tpu_custom_call.1}
  #allocation0 [shape = 'u32[]', space=smem, size = 0x4, offset = 0x4, fixed_abs, tag = 'smem constant byte address 0x4 - core index']
  #allocation1 [shape = 'u32[72,128]{1,0:T(1,128)}', space=vmem, size = 0x9000, scoped, tag = 'internal scratch']
  %s0 = inlined_call_operand.vmem [shape: f32[512,16], index: 0, kind: input, shape index: {}]
  %s1 = inlined_call_operand.vmem [shape: bf16[16,128], index: 1, kind: input, shape index: {}]
  %s2 = inlined_call_operand.vmem [shape: f32[1,128], index: 2, kind: input, shape index: {}]
  %s3 = inlined_call_operand.vmem [shape: bf16[128,128], index: 3, kind: input, shape index: {}]
  %s4 = inlined_call_operand.vmem [shape: f32[1,128], index: 4, kind: input, shape index: {}]
  %s5 = inlined_call_operand.vmem [shape: bf16[128,128], index: 5, kind: input, shape index: {}]
  %s6 = inlined_call_operand.vmem [shape: f32[1,128], index: 6, kind: input, shape index: {}]
  %s7 = inlined_call_operand.hbm [shape: bf16[512,128], index: 7, kind: output, shape index: {}]
  %s8 = sld [smem:[#allocation0]]
  $region61: #{tpu_custom_call.1} parent=0
    _
  %s10 = ssub.s32 1, %s8
  %s11 = scalar_select 0, %s10, %s8
  $region1: #{tpu_custom_call.1} parent=0
    #allocation2 [shape = 'u8[131072]{0}', space=vmem, size = 0x20000, scoped, tag = 'output window, operand 0']
    #allocation3 [shape = 's32[2]{0}', space=sflag, size = 0x8, scoped, tag = 'scoped memory for tpu_custom_call.1']
    %12 = vsyncpa [#allocation3], 0
    %s13 = scalar_lea.sflag [#allocation3], 1
    %14 = vsyncpa %s13, 0
    loop: start=0, step=1, limit=4
    $region2: #{tpu_custom_call.1} parent=1 // loop_pre_header
      _
    $region3: #{tpu_custom_call.1} parent=1 // loop_header
      %s16 = sphi 0, %s20
      %p17 = scmp.ge.s32.totalorder %s16, 4
      %s26 = sphi 0, %s28
      %s29 = sphi 0, %s26
      %s30 = sphi 0, %s29
      %s46 = sphi 0, %s30
      %s50 = sphi 0, %s50
      %s52 = sphi 0, %s50
      %s53 = sphi 0, %s52
      %s67 = sphi 0, %s53
      %s71 = sphi 0, %s71
      %s73 = sphi 0, %s71
      %s74 = sphi 0, %s73
      %s88 = sphi 0, %s74
      %s92 = sphi 0, %s92
      %s94 = sphi 0, %s92
      %s95 = sphi 0, %s94
      %s109 = sphi 0, %s95
      %s113 = sphi 0, %s113
      %s115 = sphi 0, %s113
      %s116 = sphi 0, %s115
      %s130 = sphi 0, %s116
      %s134 = sphi 0, %s134
      %s136 = sphi 0, %s134
      %s137 = sphi 0, %s136
      %s151 = sphi 0, %s137
      %s155 = sphi 0, %s155
      %s157 = sphi 0, %s155
      %s158 = sphi 0, %s157
      %s172 = sphi 0, %s158
      %s178 = sphi 0, %s180
      %s181 = sphi 0, %s178
      %s182 = sphi 0, %s181
      %s198 = sphi 0, %s182
    $region4: #{tpu_custom_call.1} parent=1 // loop_header_branch
      %19 = sbr.rel (%p17) target = $region8
    $region5: #{tpu_custom_call.1} parent=1 // loop_body
      %s21 = ssub.s32 %s16, 1
      %s22 = ssub.s32 %s16, 2
      %s23 = sadd.s32 %s16, 1
      %s24 = ssub.s32 %s16, %s23
      %p25 = scmp.eq.s32.totalorder %s24, 0
      %s27 = sadd.s32 %s26, 1
      %s28 = scalar_select %p25, %s26, %s27
      %p31 = pneg %p25
      %p32 = scmp.eq.s32.totalorder %s16, 1
      %p33 = por %p31, %p32
      %p34 = scmp.ne.s32.totalorder %s26, %s29
      %p35 = scmp.eq.s32.totalorder %s16, 0
      %p36 = por %p34, %p35
      %p37 = scmp.ne.s32.totalorder %s26, %s29
      %p38 = scmp.eq.s32.totalorder %s21, 1
      %p39 = por %p37, %p38
      %p40 = scmp.ne.s32.totalorder %s29, %s30
      %p41 = scmp.eq.s32.totalorder %s21, 0
      %p42 = por %p40, %p41
      %p43 = scmp.ne.s32.totalorder %s29, %s30
      %p44 = scmp.eq.s32.totalorder %s22, 1
      %p45 = por %p43, %p44
      %p47 = scmp.ne.s32.totalorder %s30, %s46
      %p48 = scmp.eq.s32.totalorder %s22, 0
      %p49 = por %p47, %p48
      %s51 = sadd.s32 %s50, 1
      %p54 = scmp.eq.s32.totalorder %s16, 1
      %p55 = scmp.ne.s32.totalorder %s50, %s52
      %p56 = scmp.eq.s32.totalorder %s16, 0
      %p57 = por %p55, %p56
      %p58 = scmp.ne.s32.totalorder %s50, %s52
      %p59 = scmp.eq.s32.totalorder %s21, 1
      %p60 = por %p58, %p59
      %p61 = scmp.ne.s32.totalorder %s52, %s53
      %p62 = scmp.eq.s32.totalorder %s21, 0
      %p63 = por %p61, %p62
      %p64 = scmp.ne.s32.totalorder %s52, %s53
      %p65 = scmp.eq.s32.totalorder %s22, 1
      %p66 = por %p64, %p65
      %p68 = scmp.ne.s32.totalorder %s53, %s67
      %p69 = scmp.eq.s32.totalorder %s22, 0
      %p70 = por %p68, %p69
      %s72 = sadd.s32 %s71, 1
      %p75 = scmp.eq.s32.totalorder %s16, 1
      %p76 = scmp.ne.s32.totalorder %s71, %s73
      %p77 = scmp.eq.s32.totalorder %s16, 0
      %p78 = por %p76, %p77
      %p79 = scmp.ne.s32.totalorder %s71, %s73
      %p80 = scmp.eq.s32.totalorder %s21, 1
      %p81 = por %p79, %p80
      %p82 = scmp.ne.s32.totalorder %s73, %s74
      %p83 = scmp.eq.s32.totalorder %s21, 0
      %p84 = por %p82, %p83
      %p85 = scmp.ne.s32.totalorder %s73, %s74
      %p86 = scmp.eq.s32.totalorder %s22, 1
      %p87 = por %p85, %p86
      %p89 = scmp.ne.s32.totalorder %s74, %s88
      %p90 = scmp.eq.s32.totalorder %s22, 0
      %p91 = por %p89, %p90
      %s93 = sadd.s32 %s92, 1
      %p96 = scmp.eq.s32.totalorder %s16, 1
      %p97 = scmp.ne.s32.totalorder %s92, %s94
      %p98 = scmp.eq.s32.totalorder %s16, 0
      %p99 = por %p97, %p98
      %p100 = scmp.ne.s32.totalorder %s92, %s94
      %p101 = scmp.eq.s32.totalorder %s21, 1
      %p102 = por %p100, %p101
      %p103 = scmp.ne.s32.totalorder %s94, %s95
      %p104 = scmp.eq.s32.totalorder %s21, 0
      %p105 = por %p103, %p104
      %p106 = scmp.ne.s32.totalorder %s94, %s95
      %p107 = scmp.eq.s32.totalorder %s22, 1
      %p108 = por %p106, %p107
      %p110 = scmp.ne.s32.totalorder %s95, %s109
      %p111 = scmp.eq.s32.totalorder %s22, 0
      %p112 = por %p110, %p111
      %s114 = sadd.s32 %s113, 1
      %p117 = scmp.eq.s32.totalorder %s16, 1
      %p118 = scmp.ne.s32.totalorder %s113, %s115
      %p119 = scmp.eq.s32.totalorder %s16, 0
      %p120 = por %p118, %p119
      %p121 = scmp.ne.s32.totalorder %s113, %s115
      %p122 = scmp.eq.s32.totalorder %s21, 1
      %p123 = por %p121, %p122
      %p124 = scmp.ne.s32.totalorder %s115, %s116
      %p125 = scmp.eq.s32.totalorder %s21, 0
      %p126 = por %p124, %p125
      %p127 = scmp.ne.s32.totalorder %s115, %s116
      %p128 = scmp.eq.s32.totalorder %s22, 1
      %p129 = por %p127, %p128
      %p131 = scmp.ne.s32.totalorder %s116, %s130
      %p132 = scmp.eq.s32.totalorder %s22, 0
      %p133 = por %p131, %p132
      %s135 = sadd.s32 %s134, 1
      %p138 = scmp.eq.s32.totalorder %s16, 1
      %p139 = scmp.ne.s32.totalorder %s134, %s136
      %p140 = scmp.eq.s32.totalorder %s16, 0
      %p141 = por %p139, %p140
      %p142 = scmp.ne.s32.totalorder %s134, %s136
      %p143 = scmp.eq.s32.totalorder %s21, 1
      %p144 = por %p142, %p143
      %p145 = scmp.ne.s32.totalorder %s136, %s137
      %p146 = scmp.eq.s32.totalorder %s21, 0
      %p147 = por %p145, %p146
      %p148 = scmp.ne.s32.totalorder %s136, %s137
      %p149 = scmp.eq.s32.totalorder %s22, 1
      %p150 = por %p148, %p149
      %p152 = scmp.ne.s32.totalorder %s137, %s151
      %p153 = scmp.eq.s32.totalorder %s22, 0
      %p154 = por %p152, %p153
      %s156 = sadd.s32 %s155, 1
      %p159 = scmp.eq.s32.totalorder %s16, 1
      %p160 = scmp.ne.s32.totalorder %s155, %s157
      %p161 = scmp.eq.s32.totalorder %s16, 0
      %p162 = por %p160, %p161
      %p163 = scmp.ne.s32.totalorder %s155, %s157
      %p164 = scmp.eq.s32.totalorder %s21, 1
      %p165 = por %p163, %p164
      %p166 = scmp.ne.s32.totalorder %s157, %s158
      %p167 = scmp.eq.s32.totalorder %s21, 0
      %p168 = por %p166, %p167
      %p169 = scmp.ne.s32.totalorder %s157, %s158
      %p170 = scmp.eq.s32.totalorder %s22, 1
      %p171 = por %p169, %p170
      %p173 = scmp.ne.s32.totalorder %s158, %s172
      %p174 = scmp.eq.s32.totalorder %s22, 0
      %p175 = por %p173, %p174
      %s176 = ssub.s32 %s16, %s23
      %p177 = scmp.eq.s32.totalorder %s176, 0
      %s179 = sadd.s32 %s178, 1
      %s180 = scalar_select %p177, %s178, %s179
      %p183 = pneg %p177
      %p184 = scmp.eq.s32.totalorder %s16, 1
      %p185 = por %p183, %p184
      %p186 = scmp.ne.s32.totalorder %s178, %s181
      %p187 = scmp.eq.s32.totalorder %s16, 0
      %p188 = por %p186, %p187
      %p189 = scmp.ne.s32.totalorder %s178, %s181
      %p190 = scmp.eq.s32.totalorder %s21, 1
      %p191 = por %p189, %p190
      %p192 = scmp.ne.s32.totalorder %s181, %s182
      %p193 = scmp.eq.s32.totalorder %s21, 0
      %p194 = por %p192, %p193
      %p195 = scmp.ne.s32.totalorder %s181, %s182
      %p196 = scmp.eq.s32.totalorder %s22, 1
      %p197 = por %p195, %p196
      %p199 = scmp.ne.s32.totalorder %s182, %s198
      %p200 = scmp.eq.s32.totalorder %s22, 0
      %p201 = por %p199, %p200
      %p202 = scmp.le.s32.totalorder 1, %s16
      %p203 = scmp.lt.s32.totalorder %s16, 3
      %p204 = pnand %p202, %p203
      %p205 = pneg %p204
      // Predicated region
      $region9: #{tpu_custom_call.1} parent=5 // pred_check
        _
      $region10: #{tpu_custom_call.1} parent=5 // pred_check_branch
        %207 = sbr.rel (%p204) target = $region12
      $region11: #{tpu_custom_call.1} parent=5 // pred_region
        %s208 = ssub.s32 %s16, 1
        // Predicated region
        $region13: #{tpu_custom_call.1} parent=11 // pred_check
          %p209 = pneg %p63
        $region14: #{tpu_custom_call.1} parent=11 // pred_check_branch
          %211 = sbr.rel (%p209) target = $region16
        $region15: #{tpu_custom_call.1} parent=11 // pred_region
          _
        $region16: #{tpu_custom_call.1} parent=11 // pred_fallthru
          _
        // Predicated region
        $region17: #{tpu_custom_call.1} parent=11 // pred_check
          %p212 = pneg %p84
        $region18: #{tpu_custom_call.1} parent=11 // pred_check_branch
          %214 = sbr.rel (%p212) target = $region20
        $region19: #{tpu_custom_call.1} parent=11 // pred_region
          _
        $region20: #{tpu_custom_call.1} parent=11 // pred_fallthru
          _
        // Predicated region
        $region21: #{tpu_custom_call.1} parent=11 // pred_check
          %p215 = pneg %p105
        $region22: #{tpu_custom_call.1} parent=11 // pred_check_branch
          %217 = sbr.rel (%p215) target = $region24
        $region23: #{tpu_custom_call.1} parent=11 // pred_region
          _
        $region24: #{tpu_custom_call.1} parent=11 // pred_fallthru
          _
        // Predicated region
        $region25: #{tpu_custom_call.1} parent=11 // pred_check
          %p218 = pneg %p126
        $region26: #{tpu_custom_call.1} parent=11 // pred_check_branch
          %220 = sbr.rel (%p218) target = $region28
        $region27: #{tpu_custom_call.1} parent=11 // pred_region
          _
        $region28: #{tpu_custom_call.1} parent=11 // pred_fallthru
          _
        // Predicated region
        $region29: #{tpu_custom_call.1} parent=11 // pred_check
          %p221 = pneg %p147
        $region30: #{tpu_custom_call.1} parent=11 // pred_check_branch
          %223 = sbr.rel (%p221) target = $region32
        $region31: #{tpu_custom_call.1} parent=11 // pred_region
          _
        $region32: #{tpu_custom_call.1} parent=11 // pred_fallthru
          _
        // Predicated region
        $region33: #{tpu_custom_call.1} parent=11 // pred_check
          %p224 = pneg %p168
        $region34: #{tpu_custom_call.1} parent=11 // pred_check_branch
          %226 = sbr.rel (%p224) target = $region36
        $region35: #{tpu_custom_call.1} parent=11 // pred_region
          _
        $region36: #{tpu_custom_call.1} parent=11 // pred_fallthru
          _
      $region12: #{tpu_custom_call.1} parent=5 // pred_fallthru
        _
      %p227 = scmp.lt.s32.totalorder %s16, 2
      // Predicated region
      $region37: #{tpu_custom_call.1} parent=5 // pred_check
        %p228 = pneg %p227
      $region38: #{tpu_custom_call.1} parent=5 // pred_check_branch
        %230 = sbr.rel (%p228) target = $region40
      $region39: #{tpu_custom_call.1} parent=5 // pred_region
        // Predicated region
        $region41: #{tpu_custom_call.1} parent=39 // pred_check
          %p231 = pneg %p36
        $region42: #{tpu_custom_call.1} parent=39 // pred_check_branch
          %233 = sbr.rel (%p231) target = $region44
        $region43: #{tpu_custom_call.1} parent=39 // pred_region
          %s234 = smul.u32 32, %s16
          %p235 = scmp.lt.s32.totalorder %s234, 63
          %s236 = scalar_select %p235, %s234, 63
          %s237 = smul.addr %s236, 8
          %s238 = scalar_lea.vmem %s0, %s237
          %s239 = smul.u32 32, %s16
        $region44: #{tpu_custom_call.1} parent=39 // pred_fallthru
          _
      $region40: #{tpu_custom_call.1} parent=5 // pred_fallthru
        _
      %p240 = scmp.le.s32.totalorder 1, %s16
      %p241 = scmp.lt.s32.totalorder %s16, 3
      %p242 = pnand %p240, %p241
      %p243 = pneg %p242
      // Predicated region
      $region45: #{tpu_custom_call.1} parent=5 // pred_check
        _
      $region46: #{tpu_custom_call.1} parent=5 // pred_check_branch
        %245 = sbr.rel (%p242) target = $region48
      $region47: #{tpu_custom_call.1} parent=5 // pred_region
        %s246 = ssub.s32 %s16, 1
        %s247 = smul.u32 32, %s21
        %p248 = scmp.lt.s32.totalorder %s247, 63
        %s249 = scalar_select %p248, %s247, 63
        %s250 = smul.addr %s249, 8
        %s251 = scalar_lea.vmem %s0, %s250
        %p252 = pneg %p42
        %p253 = pneg %p39
        %p254 = pneg %p63
        %p255 = pneg %p60
        %p256 = pneg %p84
        %p257 = pneg %p81
        %p258 = pneg %p105
        %p259 = pneg %p102
        %p260 = pneg %p126
        %p261 = pneg %p123
        %p262 = pneg %p147
        %p263 = pneg %p144
        %p264 = pneg %p168
        %p265 = pneg %p165
        %p266 = pneg %p194
        %p267 = pneg %p191
        %s268 = sand.u32 %s181, 1
        %s269 = scalar_lea.sflag [#allocation3], %s268
        %s270 = sand.u32 %s181, 1
        %s271 = smul.addr %s270, 128
        %s272 = scalar_lea.vmem [#allocation2], %s271
        %s273 = smul.u32 32, %s21
        %p274 = scmp.lt.s32.totalorder %s273, 63
        %s275 = scalar_select %p274, %s273, 63
        %s276 = smul.addr %s275, 8
        %s277 = scalar_lea.vmem %s0, %s276
        %s278 = smul.u32 32, %s21
        %s279 = smul.u32 32, %s21
        %v281 = vld [vmem:[%s277] sm:$0xff]
        %v282 = vld [vmem:[%s277 + $0x8] sm:$0xff]
        %v283 = vld [vmem:[%s277 + $0x10] sm:$0xff]
        %v284 = vld [vmem:[%s277 + $0x18] sm:$0xff]
        %v285 = vld [vmem:[%s277 + $0x20] sm:$0xff]
        %v286 = vld [vmem:[%s277 + $0x28] sm:$0xff]
        %v287 = vld [vmem:[%s277 + $0x30] sm:$0xff]
        %v288 = vld [vmem:[%s277 + $0x38] sm:$0xff]
        %v289 = vld [vmem:[%s277 + $0x40] sm:$0xff]
        %v290 = vld [vmem:[%s277 + $0x48] sm:$0xff]
        %v291 = vld [vmem:[%s277 + $0x50] sm:$0xff]
        %v292 = vld [vmem:[%s277 + $0x58] sm:$0xff]
        %v293 = vld [vmem:[%s277 + $0x60] sm:$0xff]
        %v294 = vld [vmem:[%s277 + $0x68] sm:$0xff]
        %v295 = vld [vmem:[%s277 + $0x70] sm:$0xff]
        %v296 = vld [vmem:[%s277 + $0x78] sm:$0xff]
        %v297 = vld [vmem:[%s277 + $0x80] sm:$0xff]
        %v298 = vld [vmem:[%s277 + $0x88] sm:$0xff]
        %v299 = vld [vmem:[%s277 + $0x90] sm:$0xff]
        %v300 = vld [vmem:[%s277 + $0x98] sm:$0xff]
        %v301 = vld [vmem:[%s277 + $0xa0] sm:$0xff]
        %v302 = vld [vmem:[%s277 + $0xa8] sm:$0xff]
        %v303 = vld [vmem:[%s277 + $0xb0] sm:$0xff]
        %v304 = vld [vmem:[%s277 + $0xb8] sm:$0xff]
        %v305 = vld [vmem:[%s277 + $0xc0] sm:$0xff]
        %v306 = vld [vmem:[%s277 + $0xc8] sm:$0xff]
        %v307 = vld [vmem:[%s277 + $0xd0] sm:$0xff]
        %v308 = vld [vmem:[%s277 + $0xd8] sm:$0xff]
        %v309 = vld [vmem:[%s277 + $0xe0] sm:$0xff]
        %v310 = vld [vmem:[%s277 + $0xe8] sm:$0xff]
        %v311 = vld [vmem:[%s277 + $0xf0] sm:$0xff]
        %v312 = vld [vmem:[%s277 + $0xf8] sm:$0xff]
        %v313 = vpack.c.bf16 %v282, %v281
        %v314 = vpack.c.bf16 %v284, %v283
        %v315 = vpack.c.bf16 %v286, %v285
        %v316 = vpack.c.bf16 %v288, %v287
        %v317 = vpack.c.bf16 %v290, %v289
        %v318 = vpack.c.bf16 %v292, %v291
        %v319 = vpack.c.bf16 %v294, %v293
        %v320 = vpack.c.bf16 %v296, %v295
        %v321 = vpack.c.bf16 %v298, %v297
        %v322 = vpack.c.bf16 %v300, %v299
        %v323 = vpack.c.bf16 %v302, %v301
        %v324 = vpack.c.bf16 %v304, %v303
        %v325 = vpack.c.bf16 %v306, %v305
        %v326 = vpack.c.bf16 %v308, %v307
        %v327 = vpack.c.bf16 %v310, %v309
        %v328 = vpack.c.bf16 %v312, %v311
        %v329 = vld [vmem:[%s1] sm:$0xf]
        %v330 = vld [vmem:[%s1 + $0x4] sm:$0xf]
        %v331 = vld [vmem:[%s2] sm:$0x1]
        %v333 = vperm.slane %v331, 0
        %v337 = vunpack.c.l.b16 %v329
        %v338 = vunpack.c.l.b16 %v330
        %v339 = vpack.c.b16 %v338, %v337
        %vm341 = vcmask 130048
        %v343 = vsel %vm341, %v313, 0
        %v346 = vsel %vm341, %v314, 0
        %v349 = vsel %vm341, %v315, 0
        %v352 = vsel %vm341, %v316, 0
        %v355 = vsel %vm341, %v317, 0
        %v358 = vsel %vm341, %v318, 0
        %v361 = vsel %vm341, %v319, 0
        %v364 = vsel %vm341, %v320, 0
        %v367 = vsel %vm341, %v321, 0
        %v370 = vsel %vm341, %v322, 0
        %v373 = vsel %vm341, %v323, 0
        %v376 = vsel %vm341, %v324, 0
        %v379 = vsel %vm341, %v325, 0
        %v382 = vsel %vm341, %v326, 0
        %v385 = vsel %vm341, %v327, 0
        %v388 = vsel %vm341, %v328, 0
        %390 = vmatpush.bf16.msra.mxu0 0
        %391 = vmatpush.bf16.msra.mxu0 0
        %392 = vmatpush.bf16.msra.mxu0 0
        %393 = vmatpush.bf16.msra.mxu0 0
        %394 = vmatpush.bf16.msra.mxu0 0
        %395 = vmatpush.bf16.msra.mxu0 0
        %396 = vmatpush.bf16.msra.mxu0 0
        %397 = vmatpush.bf16.msra.mxu0 %v339
        %398 = vmatmul.bf16.gmra.mxu0 %v343
        %v399 = vpop.f32.mrf.mxu0
        %v400 = vadd.f32 %v333, %v399
        %v401 = vpop.f32.mrf.mxu0
        %v402 = vadd.f32 %v333, %v401
        %403 = vmatmul.bf16.gmra.mxu0 %v346
        %v404 = vpop.f32.mrf.mxu0
        %v405 = vadd.f32 %v333, %v404
        %v406 = vpop.f32.mrf.mxu0
        %v407 = vadd.f32 %v333, %v406
        %408 = vmatmul.bf16.gmra.mxu0 %v349
        %v409 = vpop.f32.mrf.mxu0
        %v410 = vadd.f32 %v333, %v409
        %v411 = vpop.f32.mrf.mxu0
        %v412 = vadd.f32 %v333, %v411
        %413 = vmatmul.bf16.gmra.mxu0 %v352
        %v414 = vpop.f32.mrf.mxu0
        %v415 = vadd.f32 %v333, %v414
        %v416 = vpop.f32.mrf.mxu0
        %v417 = vadd.f32 %v333, %v416
        %418 = vmatmul.bf16.gmra.mxu0 %v355
        %v419 = vpop.f32.mrf.mxu0
        %v420 = vadd.f32 %v333, %v419
        %v421 = vpop.f32.mrf.mxu0
        %v422 = vadd.f32 %v333, %v421
        %423 = vmatmul.bf16.gmra.mxu0 %v358
        %v424 = vpop.f32.mrf.mxu0
        %v425 = vadd.f32 %v333, %v424
        %v426 = vpop.f32.mrf.mxu0
        %v427 = vadd.f32 %v333, %v426
        %428 = vmatmul.bf16.gmra.mxu0 %v361
        %v429 = vpop.f32.mrf.mxu0
        %v430 = vadd.f32 %v333, %v429
        %v431 = vpop.f32.mrf.mxu0
        %v432 = vadd.f32 %v333, %v431
        %433 = vmatmul.bf16.gmra.mxu0 %v364
        %v434 = vpop.f32.mrf.mxu0
        %v435 = vadd.f32 %v333, %v434
        %v436 = vpop.f32.mrf.mxu0
        %v437 = vadd.f32 %v333, %v436
        %438 = vmatmul.bf16.gmra.mxu0 %v367
        %v439 = vpop.f32.mrf.mxu0
        %v440 = vadd.f32 %v333, %v439
        %v441 = vpop.f32.mrf.mxu0
        %v442 = vadd.f32 %v333, %v441
        %443 = vmatmul.bf16.gmra.mxu0 %v370
        %v444 = vpop.f32.mrf.mxu0
        %v445 = vadd.f32 %v333, %v444
        %v446 = vpop.f32.mrf.mxu0
        %v447 = vadd.f32 %v333, %v446
        %448 = vmatmul.bf16.gmra.mxu0 %v373
        %v449 = vpop.f32.mrf.mxu0
        %v450 = vadd.f32 %v333, %v449
        %v451 = vpop.f32.mrf.mxu0
        %v452 = vadd.f32 %v333, %v451
        %453 = vmatmul.bf16.gmra.mxu0 %v376
        %v454 = vpop.f32.mrf.mxu0
        %v455 = vadd.f32 %v333, %v454
        %v456 = vpop.f32.mrf.mxu0
        %v457 = vadd.f32 %v333, %v456
        %458 = vmatmul.bf16.gmra.mxu0 %v379
        %v459 = vpop.f32.mrf.mxu0
        %v460 = vadd.f32 %v333, %v459
        %v461 = vpop.f32.mrf.mxu0
        %v462 = vadd.f32 %v333, %v461
        %463 = vmatmul.bf16.gmra.mxu0 %v382
        %v464 = vpop.f32.mrf.mxu0
        %v465 = vadd.f32 %v333, %v464
        %v466 = vpop.f32.mrf.mxu0
        %v467 = vadd.f32 %v333, %v466
        %468 = vmatmul.bf16.gmra.mxu0 %v385
        %v469 = vpop.f32.mrf.mxu0
        %v470 = vadd.f32 %v333, %v469
        %v471 = vpop.f32.mrf.mxu0
        %v472 = vadd.f32 %v333, %v471
        %473 = vmatmul.bf16.gmra.mxu0 %v388
        %v474 = vpop.f32.mrf.mxu0
        %v475 = vadd.f32 %v333, %v474
        %v476 = vpop.f32.mrf.mxu0
        %v477 = vadd.f32 %v333, %v476
        %478 = vdwg.mxu0
        %v479 = vmax.f32 %v400, 0.0
        %v480 = vmax.f32 %v402, 0.0
        %v481 = vmax.f32 %v405, 0.0
        %v482 = vmax.f32 %v407, 0.0
        %v483 = vmax.f32 %v410, 0.0
        %v484 = vmax.f32 %v412, 0.0
        %v485 = vmax.f32 %v415, 0.0
        %v486 = vmax.f32 %v417, 0.0
        %v487 = vmax.f32 %v420, 0.0
        %v488 = vmax.f32 %v422, 0.0
        %v489 = vmax.f32 %v425, 0.0
        %v490 = vmax.f32 %v427, 0.0
        %v491 = vmax.f32 %v430, 0.0
        %v492 = vmax.f32 %v432, 0.0
        %v493 = vmax.f32 %v435, 0.0
        %v494 = vmax.f32 %v437, 0.0
        %v495 = vmax.f32 %v440, 0.0
        %v496 = vmax.f32 %v442, 0.0
        %v497 = vmax.f32 %v445, 0.0
        %v498 = vmax.f32 %v447, 0.0
        %v499 = vmax.f32 %v450, 0.0
        %v500 = vmax.f32 %v452, 0.0
        %v501 = vmax.f32 %v455, 0.0
        %v502 = vmax.f32 %v457, 0.0
        %v503 = vmax.f32 %v460, 0.0
        %v504 = vmax.f32 %v462, 0.0
        %v505 = vmax.f32 %v465, 0.0
        %v506 = vmax.f32 %v467, 0.0
        %v507 = vmax.f32 %v470, 0.0
        %v508 = vmax.f32 %v472, 0.0
        %v509 = vmax.f32 %v475, 0.0
        %v510 = vmax.f32 %v477, 0.0
        %v511 = vpack.c.bf16 %v480, %v479
        %v512 = vpack.c.bf16 %v482, %v481
        %v513 = vpack.c.bf16 %v484, %v483
        %v514 = vpack.c.bf16 %v486, %v485
        %v515 = vpack.c.bf16 %v488, %v487
        %v516 = vpack.c.bf16 %v490, %v489
        %v517 = vpack.c.bf16 %v492, %v491
        %v518 = vpack.c.bf16 %v494, %v493
        %v519 = vpack.c.bf16 %v496, %v495
        %v520 = vpack.c.bf16 %v498, %v497
        %v521 = vpack.c.bf16 %v500, %v499
        %v522 = vpack.c.bf16 %v502, %v501
        %v523 = vpack.c.bf16 %v504, %v503
        %v524 = vpack.c.bf16 %v506, %v505
        %v525 = vpack.c.bf16 %v508, %v507
        %v526 = vpack.c.bf16 %v510, %v509
        %v527 = vld [vmem:[%s3] sm:$0xf]
        %v528 = vld [vmem:[%s3 + $0x4] sm:$0xf]
        %v529 = vld [vmem:[%s3 + $0x8] sm:$0xf]
        %v530 = vld [vmem:[%s3 + $0xc] sm:$0xf]
        %v531 = vld [vmem:[%s3 + $0x10] sm:$0xf]
        %v532 = vld [vmem:[%s3 + $0x14] sm:$0xf]
        %v533 = vld [vmem:[%s3 + $0x18] sm:$0xf]
        %v534 = vld [vmem:[%s3 + $0x1c] sm:$0xf]
        %v535 = vld [vmem:[%s3 + $0x20] sm:$0xf]
        %v536 = vld [vmem:[%s3 + $0x24] sm:$0xf]
        %v537 = vld [vmem:[%s3 + $0x28] sm:$0xf]
        %v538 = vld [vmem:[%s3 + $0x2c] sm:$0xf]
        %v539 = vld [vmem:[%s3 + $0x30] sm:$0xf]
        %v540 = vld [vmem:[%s3 + $0x34] sm:$0xf]
        %v541 = vld [vmem:[%s3 + $0x38] sm:$0xf]
        %v542 = vld [vmem:[%s3 + $0x3c] sm:$0xf]
        %v543 = vld [vmem:[%s4] sm:$0x1]
        %v545 = vperm.slane %v543, 0
        %v563 = vunpack.c.l.b16 %v527
        %v564 = vunpack.c.l.b16 %v528
        %v565 = vunpack.c.l.b16 %v529
        %v566 = vunpack.c.l.b16 %v530
        %v567 = vunpack.c.l.b16 %v531
        %v568 = vunpack.c.l.b16 %v532
        %v569 = vunpack.c.l.b16 %v533
        %v570 = vunpack.c.l.b16 %v534
        %v571 = vunpack.c.l.b16 %v535
        %v572 = vunpack.c.l.b16 %v536
        %v573 = vunpack.c.l.b16 %v537
        %v574 = vunpack.c.l.b16 %v538
        %v575 = vunpack.c.l.b16 %v539
        %v576 = vunpack.c.l.b16 %v540
        %v577 = vunpack.c.l.b16 %v541
        %v578 = vunpack.c.l.b16 %v542
        %v579 = vpack.c.b16 %v564, %v563
        %v580 = vpack.c.b16 %v566, %v565
        %v581 = vpack.c.b16 %v568, %v567
        %v582 = vpack.c.b16 %v570, %v569
        %v583 = vpack.c.b16 %v572, %v571
        %v584 = vpack.c.b16 %v574, %v573
        %v585 = vpack.c.b16 %v576, %v575
        %v586 = vpack.c.b16 %v578, %v577
        %595 = vmatpush.bf16.msra.mxu0 %v586
        %596 = vmatpush.bf16.msra.mxu0 %v585
        %597 = vmatpush.bf16.msra.mxu0 %v584
        %598 = vmatpush.bf16.msra.mxu0 %v583
        %599 = vmatpush.bf16.msra.mxu0 %v582
        %600 = vmatpush.bf16.msra.mxu0 %v581
        %601 = vmatpush.bf16.msra.mxu0 %v580
        %602 = vmatpush.bf16.msra.mxu0 %v579
        %603 = vmatmul.bf16.gmra.mxu0 %v511
        %v604 = vpop.f32.mrf.mxu0
        %v605 = vadd.f32 %v545, %v604
        %v606 = vpop.f32.mrf.mxu0
        %v607 = vadd.f32 %v545, %v606
        %608 = vmatmul.bf16.gmra.mxu0 %v512
        %v609 = vpop.f32.mrf.mxu0
        %v610 = vadd.f32 %v545, %v609
        %v611 = vpop.f32.mrf.mxu0
        %v612 = vadd.f32 %v545, %v611
        %613 = vmatmul.bf16.gmra.mxu0 %v513
        %v614 = vpop.f32.mrf.mxu0
        %v615 = vadd.f32 %v545, %v614
        %v616 = vpop.f32.mrf.mxu0
        %v617 = vadd.f32 %v545, %v616
        %618 = vmatmul.bf16.gmra.mxu0 %v514
        %v619 = vpop.f32.mrf.mxu0
        %v620 = vadd.f32 %v545, %v619
        %v621 = vpop.f32.mrf.mxu0
        %v622 = vadd.f32 %v545, %v621
        %623 = vmatmul.bf16.gmra.mxu0 %v515
        %v624 = vpop.f32.mrf.mxu0
        %v625 = vadd.f32 %v545, %v624
        %v626 = vpop.f32.mrf.mxu0
        %v627 = vadd.f32 %v545, %v626
        %628 = vmatmul.bf16.gmra.mxu0 %v516
        %v629 = vpop.f32.mrf.mxu0
        %v630 = vadd.f32 %v545, %v629
        %v631 = vpop.f32.mrf.mxu0
        %v632 = vadd.f32 %v545, %v631
        %633 = vmatmul.bf16.gmra.mxu0 %v517
        %v634 = vpop.f32.mrf.mxu0
        %v635 = vadd.f32 %v545, %v634
        %v636 = vpop.f32.mrf.mxu0
        %v637 = vadd.f32 %v545, %v636
        %638 = vmatmul.bf16.gmra.mxu0 %v518
        %v639 = vpop.f32.mrf.mxu0
        %v640 = vadd.f32 %v545, %v639
        %v641 = vpop.f32.mrf.mxu0
        %v642 = vadd.f32 %v545, %v641
        %643 = vmatmul.bf16.gmra.mxu0 %v519
        %v644 = vpop.f32.mrf.mxu0
        %v645 = vadd.f32 %v545, %v644
        %v646 = vpop.f32.mrf.mxu0
        %v647 = vadd.f32 %v545, %v646
        %648 = vmatmul.bf16.gmra.mxu0 %v520
        %v649 = vpop.f32.mrf.mxu0
        %v650 = vadd.f32 %v545, %v649
        %v651 = vpop.f32.mrf.mxu0
        %v652 = vadd.f32 %v545, %v651
        %653 = vmatmul.bf16.gmra.mxu0 %v521
        %v654 = vpop.f32.mrf.mxu0
        %v655 = vadd.f32 %v545, %v654
        %v656 = vpop.f32.mrf.mxu0
        %v657 = vadd.f32 %v545, %v656
        %658 = vmatmul.bf16.gmra.mxu0 %v522
        %v659 = vpop.f32.mrf.mxu0
        %v660 = vadd.f32 %v545, %v659
        %v661 = vpop.f32.mrf.mxu0
        %v662 = vadd.f32 %v545, %v661
        %663 = vmatmul.bf16.gmra.mxu0 %v523
        %v664 = vpop.f32.mrf.mxu0
        %v665 = vadd.f32 %v545, %v664
        %v666 = vpop.f32.mrf.mxu0
        %v667 = vadd.f32 %v545, %v666
        %668 = vmatmul.bf16.gmra.mxu0 %v524
        %v669 = vpop.f32.mrf.mxu0
        %v670 = vadd.f32 %v545, %v669
        %v671 = vpop.f32.mrf.mxu0
        %v672 = vadd.f32 %v545, %v671
        %673 = vmatmul.bf16.gmra.mxu0 %v525
        %v674 = vpop.f32.mrf.mxu0
        %v675 = vadd.f32 %v545, %v674
        %v676 = vpop.f32.mrf.mxu0
        %v677 = vadd.f32 %v545, %v676
        %678 = vmatmul.bf16.gmra.mxu0 %v526
        %v679 = vpop.f32.mrf.mxu0
        %v680 = vadd.f32 %v545, %v679
        %v681 = vpop.f32.mrf.mxu0
        %v682 = vadd.f32 %v545, %v681
        %683 = vdwg.mxu0
        %v684 = vmax.f32 %v605, 0.0
        %v685 = vmax.f32 %v607, 0.0
        %v686 = vmax.f32 %v610, 0.0
        %v687 = vmax.f32 %v612, 0.0
        %v688 = vmax.f32 %v615, 0.0
        %v689 = vmax.f32 %v617, 0.0
        %v690 = vmax.f32 %v620, 0.0
        %v691 = vmax.f32 %v622, 0.0
        %v692 = vmax.f32 %v625, 0.0
        %v693 = vmax.f32 %v627, 0.0
        %v694 = vmax.f32 %v630, 0.0
        %v695 = vmax.f32 %v632, 0.0
        %v696 = vmax.f32 %v635, 0.0
        %v697 = vmax.f32 %v637, 0.0
        %v698 = vmax.f32 %v640, 0.0
        %v699 = vmax.f32 %v642, 0.0
        %v700 = vmax.f32 %v645, 0.0
        %v701 = vmax.f32 %v647, 0.0
        %v702 = vmax.f32 %v650, 0.0
        %v703 = vmax.f32 %v652, 0.0
        %v704 = vmax.f32 %v655, 0.0
        %v705 = vmax.f32 %v657, 0.0
        %v706 = vmax.f32 %v660, 0.0
        %v707 = vmax.f32 %v662, 0.0
        %v708 = vmax.f32 %v665, 0.0
        %v709 = vmax.f32 %v667, 0.0
        %v710 = vmax.f32 %v670, 0.0
        %v711 = vmax.f32 %v672, 0.0
        %v712 = vmax.f32 %v675, 0.0
        %v713 = vmax.f32 %v677, 0.0
        %v714 = vmax.f32 %v680, 0.0
        %v715 = vmax.f32 %v682, 0.0
        %v716 = vpack.c.bf16 %v685, %v684
        %v717 = vpack.c.bf16 %v687, %v686
        %v718 = vpack.c.bf16 %v689, %v688
        %v719 = vpack.c.bf16 %v691, %v690
        %v720 = vpack.c.bf16 %v693, %v692
        %v721 = vpack.c.bf16 %v695, %v694
        %v722 = vpack.c.bf16 %v697, %v696
        %v723 = vpack.c.bf16 %v699, %v698
        %v724 = vpack.c.bf16 %v701, %v700
        %v725 = vpack.c.bf16 %v703, %v702
        %v726 = vpack.c.bf16 %v705, %v704
        %v727 = vpack.c.bf16 %v707, %v706
        %v728 = vpack.c.bf16 %v709, %v708
        %v729 = vpack.c.bf16 %v711, %v710
        %v730 = vpack.c.bf16 %v713, %v712
        %v731 = vpack.c.bf16 %v715, %v714
        %v732 = vld [vmem:[%s5] sm:$0xf]
        %v733 = vld [vmem:[%s5 + $0x4] sm:$0xf]
        %v734 = vld [vmem:[%s5 + $0x8] sm:$0xf]
        %v735 = vld [vmem:[%s5 + $0xc] sm:$0xf]
        %v736 = vld [vmem:[%s5 + $0x10] sm:$0xf]
        %v737 = vld [vmem:[%s5 + $0x14] sm:$0xf]
        %v738 = vld [vmem:[%s5 + $0x18] sm:$0xf]
        %v739 = vld [vmem:[%s5 + $0x1c] sm:$0xf]
        %v740 = vld [vmem:[%s5 + $0x20] sm:$0xf]
        %v741 = vld [vmem:[%s5 + $0x24] sm:$0xf]
        %v742 = vld [vmem:[%s5 + $0x28] sm:$0xf]
        %v743 = vld [vmem:[%s5 + $0x2c] sm:$0xf]
        %v744 = vld [vmem:[%s5 + $0x30] sm:$0xf]
        %v745 = vld [vmem:[%s5 + $0x34] sm:$0xf]
        %v746 = vld [vmem:[%s5 + $0x38] sm:$0xf]
        %v747 = vld [vmem:[%s5 + $0x3c] sm:$0xf]
        %v748 = vld [vmem:[%s6] sm:$0x1]
        %v750 = vperm.slane %v748, 0
        %v768 = vunpack.c.l.b16 %v732
        %v769 = vunpack.c.l.b16 %v733
        %v770 = vunpack.c.l.b16 %v734
        %v771 = vunpack.c.l.b16 %v735
        %v772 = vunpack.c.l.b16 %v736
        %v773 = vunpack.c.l.b16 %v737
        %v774 = vunpack.c.l.b16 %v738
        %v775 = vunpack.c.l.b16 %v739
        %v776 = vunpack.c.l.b16 %v740
        %v777 = vunpack.c.l.b16 %v741
        %v778 = vunpack.c.l.b16 %v742
        %v779 = vunpack.c.l.b16 %v743
        %v780 = vunpack.c.l.b16 %v744
        %v781 = vunpack.c.l.b16 %v745
        %v782 = vunpack.c.l.b16 %v746
        %v783 = vunpack.c.l.b16 %v747
        %v784 = vpack.c.b16 %v769, %v768
        %v785 = vpack.c.b16 %v771, %v770
        %v786 = vpack.c.b16 %v773, %v772
        %v787 = vpack.c.b16 %v775, %v774
        %v788 = vpack.c.b16 %v777, %v776
        %v789 = vpack.c.b16 %v779, %v778
        %v790 = vpack.c.b16 %v781, %v780
        %v791 = vpack.c.b16 %v783, %v782
        %800 = vmatpush.bf16.msra.mxu0 %v791
        %801 = vmatpush.bf16.msra.mxu0 %v790
        %802 = vmatpush.bf16.msra.mxu0 %v789
        %803 = vmatpush.bf16.msra.mxu0 %v788
        %804 = vmatpush.bf16.msra.mxu0 %v787
        %805 = vmatpush.bf16.msra.mxu0 %v786
        %806 = vmatpush.bf16.msra.mxu0 %v785
        %807 = vmatpush.bf16.msra.mxu0 %v784
        %808 = vmatmul.bf16.gmra.mxu0 %v716
        %v809 = vpop.f32.mrf.mxu0
        %v810 = vadd.f32 %v750, %v809
        %v811 = vpop.f32.mrf.mxu0
        %v812 = vadd.f32 %v750, %v811
        %813 = vmatmul.bf16.gmra.mxu0 %v717
        %v814 = vpop.f32.mrf.mxu0
        %v815 = vadd.f32 %v750, %v814
        %v816 = vpop.f32.mrf.mxu0
        %v817 = vadd.f32 %v750, %v816
        %818 = vmatmul.bf16.gmra.mxu0 %v718
        %v819 = vpop.f32.mrf.mxu0
        %v820 = vadd.f32 %v750, %v819
        %v821 = vpop.f32.mrf.mxu0
        %v822 = vadd.f32 %v750, %v821
        %823 = vmatmul.bf16.gmra.mxu0 %v719
        %v824 = vpop.f32.mrf.mxu0
        %v825 = vadd.f32 %v750, %v824
        %v826 = vpop.f32.mrf.mxu0
        %v827 = vadd.f32 %v750, %v826
        %828 = vmatmul.bf16.gmra.mxu0 %v720
        %v829 = vpop.f32.mrf.mxu0
        %v830 = vadd.f32 %v750, %v829
        %v831 = vpop.f32.mrf.mxu0
        %v832 = vadd.f32 %v750, %v831
        %833 = vmatmul.bf16.gmra.mxu0 %v721
        %v834 = vpop.f32.mrf.mxu0
        %v835 = vadd.f32 %v750, %v834
        %v836 = vpop.f32.mrf.mxu0
        %v837 = vadd.f32 %v750, %v836
        %838 = vmatmul.bf16.gmra.mxu0 %v722
        %v839 = vpop.f32.mrf.mxu0
        %v840 = vadd.f32 %v750, %v839
        %v841 = vpop.f32.mrf.mxu0
        %v842 = vadd.f32 %v750, %v841
        %843 = vmatmul.bf16.gmra.mxu0 %v723
        %v844 = vpop.f32.mrf.mxu0
        %v845 = vadd.f32 %v750, %v844
        %v846 = vpop.f32.mrf.mxu0
        %v847 = vadd.f32 %v750, %v846
        %848 = vmatmul.bf16.gmra.mxu0 %v724
        %v849 = vpop.f32.mrf.mxu0
        %v850 = vadd.f32 %v750, %v849
        %v851 = vpop.f32.mrf.mxu0
        %v852 = vadd.f32 %v750, %v851
        %853 = vmatmul.bf16.gmra.mxu0 %v725
        %v854 = vpop.f32.mrf.mxu0
        %v855 = vadd.f32 %v750, %v854
        %v856 = vpop.f32.mrf.mxu0
        %v857 = vadd.f32 %v750, %v856
        %858 = vmatmul.bf16.gmra.mxu0 %v726
        %v859 = vpop.f32.mrf.mxu0
        %v860 = vadd.f32 %v750, %v859
        %v861 = vpop.f32.mrf.mxu0
        %v862 = vadd.f32 %v750, %v861
        %863 = vmatmul.bf16.gmra.mxu0 %v727
        %v864 = vpop.f32.mrf.mxu0
        %v865 = vadd.f32 %v750, %v864
        %v866 = vpop.f32.mrf.mxu0
        %v867 = vadd.f32 %v750, %v866
        %868 = vmatmul.bf16.gmra.mxu0 %v728
        %v869 = vpop.f32.mrf.mxu0
        %v870 = vadd.f32 %v750, %v869
        %v871 = vpop.f32.mrf.mxu0
        %v872 = vadd.f32 %v750, %v871
        %873 = vmatmul.bf16.gmra.mxu0 %v729
        %v874 = vpop.f32.mrf.mxu0
        %v875 = vadd.f32 %v750, %v874
        %v876 = vpop.f32.mrf.mxu0
        %v877 = vadd.f32 %v750, %v876
        %878 = vmatmul.bf16.gmra.mxu0 %v730
        %v879 = vpop.f32.mrf.mxu0
        %v880 = vadd.f32 %v750, %v879
        %v881 = vpop.f32.mrf.mxu0
        %v882 = vadd.f32 %v750, %v881
        %883 = vmatmul.bf16.gmra.mxu0 %v731
        %v884 = vpop.f32.mrf.mxu0
        %v885 = vadd.f32 %v750, %v884
        %v886 = vpop.f32.mrf.mxu0
        %v887 = vadd.f32 %v750, %v886
        %888 = vdwg.mxu0
        %v889 = vpack.c.bf16 %v810, %v810
        %v890 = vpack.c.bf16 %v812, %v812
        %v891 = vpack.c.bf16 %v815, %v815
        %v892 = vpack.c.bf16 %v817, %v817
        %v893 = vpack.c.bf16 %v820, %v820
        %v894 = vpack.c.bf16 %v822, %v822
        %v895 = vpack.c.bf16 %v825, %v825
        %v896 = vpack.c.bf16 %v827, %v827
        %v897 = vpack.c.bf16 %v830, %v830
        %v898 = vpack.c.bf16 %v832, %v832
        %v899 = vpack.c.bf16 %v835, %v835
        %v900 = vpack.c.bf16 %v837, %v837
        %v901 = vpack.c.bf16 %v840, %v840
        %v902 = vpack.c.bf16 %v842, %v842
        %v903 = vpack.c.bf16 %v845, %v845
        %v904 = vpack.c.bf16 %v847, %v847
        %v905 = vpack.c.bf16 %v850, %v850
        %v906 = vpack.c.bf16 %v852, %v852
        %v907 = vpack.c.bf16 %v855, %v855
        %v908 = vpack.c.bf16 %v857, %v857
        %v909 = vpack.c.bf16 %v860, %v860
        %v910 = vpack.c.bf16 %v862, %v862
        %v911 = vpack.c.bf16 %v865, %v865
        %v912 = vpack.c.bf16 %v867, %v867
        %v913 = vpack.c.bf16 %v870, %v870
        %v914 = vpack.c.bf16 %v872, %v872
        %v915 = vpack.c.bf16 %v875, %v875
        %v916 = vpack.c.bf16 %v877, %v877
        %v917 = vpack.c.bf16 %v880, %v880
        %v918 = vpack.c.bf16 %v882, %v882
        %v919 = vpack.c.bf16 %v885, %v885
        %v920 = vpack.c.bf16 %v887, %v887
        %921 = vst [vmem:[%s272] sm:$0xf] %v889
        %922 = vst [vmem:[%s272 + $0x4] sm:$0xf] %v890
        %923 = vst [vmem:[%s272 + $0x8] sm:$0xf] %v891
        %924 = vst [vmem:[%s272 + $0xc] sm:$0xf] %v892
        %925 = vst [vmem:[%s272 + $0x10] sm:$0xf] %v893
        %926 = vst [vmem:[%s272 + $0x14] sm:$0xf] %v894
        %927 = vst [vmem:[%s272 + $0x18] sm:$0xf] %v895
        %928 = vst [vmem:[%s272 + $0x1c] sm:$0xf] %v896
        %929 = vst [vmem:[%s272 + $0x20] sm:$0xf] %v897
        %930 = vst [vmem:[%s272 + $0x24] sm:$0xf] %v898
        %931 = vst [vmem:[%s272 + $0x28] sm:$0xf] %v899
        %932 = vst [vmem:[%s272 + $0x2c] sm:$0xf] %v900
        %933 = vst [vmem:[%s272 + $0x30] sm:$0xf] %v901
        %934 = vst [vmem:[%s272 + $0x34] sm:$0xf] %v902
        %935 = vst [vmem:[%s272 + $0x38] sm:$0xf] %v903
        %936 = vst [vmem:[%s272 + $0x3c] sm:$0xf] %v904
        %937 = vst [vmem:[%s272 + $0x40] sm:$0xf] %v905
        %938 = vst [vmem:[%s272 + $0x44] sm:$0xf] %v906
        %939 = vst [vmem:[%s272 + $0x48] sm:$0xf] %v907
        %940 = vst [vmem:[%s272 + $0x4c] sm:$0xf] %v908
        %941 = vst [vmem:[%s272 + $0x50] sm:$0xf] %v909
        %942 = vst [vmem:[%s272 + $0x54] sm:$0xf] %v910
        %943 = vst [vmem:[%s272 + $0x58] sm:$0xf] %v911
        %944 = vst [vmem:[%s272 + $0x5c] sm:$0xf] %v912
        %945 = vst [vmem:[%s272 + $0x60] sm:$0xf] %v913
        %946 = vst [vmem:[%s272 + $0x64] sm:$0xf] %v914
        %947 = vst [vmem:[%s272 + $0x68] sm:$0xf] %v915
        %948 = vst [vmem:[%s272 + $0x6c] sm:$0xf] %v916
        %949 = vst [vmem:[%s272 + $0x70] sm:$0xf] %v917
        %950 = vst [vmem:[%s272 + $0x74] sm:$0xf] %v918
        %951 = vst [vmem:[%s272 + $0x78] sm:$0xf] %v919
        %952 = vst [vmem:[%s272 + $0x7c] sm:$0xf] %v920
        %s953 = sand.u32 %s181, 1
        %s954 = scalar_lea.sflag [#allocation3], %s953
        %s955 = sand.u32 %s181, 1
        %s956 = smul.addr %s955, 128
        %s957 = scalar_lea.vmem [#allocation2], %s956
        // Predicated region
        $region49: #{tpu_custom_call.1} parent=47 // pred_check
          %p958 = pneg %p191
        $region50: #{tpu_custom_call.1} parent=47 // pred_check_branch
          %960 = sbr.rel (%p958) target = $region52
        $region51: #{tpu_custom_call.1} parent=47 // pred_region
          %s961 = smul.u32 32, %s21
          %963 = vsyncadd %s954, 0
          %s964 = smul.addr %s961, 4
          %s965 = scalar_lea.hbm %s7, %s964
          %s966 = sshll.u32 %s957, 4
          %s967 = int_to_ptr.vmem [resolvable:$true] %s966
          %s968 = sshll.u32 %s965, 4
          %s969 = int_to_ptr.hbm [resolvable:$true] %s968
          %974 = dma.vmem_to_hbm [thread:$0]  %s967, 2048, %s969, %s954, 64, 64, 4
        $region52: #{tpu_custom_call.1} parent=47 // pred_fallthru
          _
      $region48: #{tpu_custom_call.1} parent=5 // pred_fallthru
        _
      %p975 = scmp.le.s32.totalorder 2, %s16
      // Predicated region
      $region53: #{tpu_custom_call.1} parent=5 // pred_check
        %p976 = pneg %p975
      $region54: #{tpu_custom_call.1} parent=5 // pred_check_branch
        %978 = sbr.rel (%p976) target = $region56
      $region55: #{tpu_custom_call.1} parent=5 // pred_region
        %s979 = ssub.s32 %s16, 2
        // Predicated region
        $region57: #{tpu_custom_call.1} parent=55 // pred_check
          %p980 = pneg %p197
        $region58: #{tpu_custom_call.1} parent=55 // pred_check_branch
          %982 = sbr.rel (%p980) target = $region60
        $region59: #{tpu_custom_call.1} parent=55 // pred_region
          %s983 = sand.u32 %s182, 1
          %s984 = scalar_lea.sflag [#allocation3], %s983
          %s985 = sand.u32 %s182, 1
          %s986 = smul.addr %s985, 128
          %s987 = scalar_lea.vmem [#allocation2], %s986
          %989 = dma.done %s984, 2048
        $region60: #{tpu_custom_call.1} parent=55 // pred_fallthru
          _
      $region56: #{tpu_custom_call.1} parent=5 // pred_fallthru
        _
    $region6: #{tpu_custom_call.1} parent=1 // loop_footer
      %s20 = sadd.s32 1, %s16
    $region7: #{tpu_custom_call.1} parent=1 // loop_footer_branch
      %15 = sbr.rel target = $region3
    $region8: #{tpu_custom_call.1} parent=1 // loop_exit
      _
    %990 = vsyncpa [#allocation3], 1
    %s991 = scalar_lea.sflag [#allocation3], 1
    %992 = vsyncpa %s991, 1

</llo_original>
